<compile_context>
chip_gen: v5e
topology: v5e:2x2
jax: 0.10.0
libtpu: 0.0.40
codegen_flags: <defaults>
</compile_context>

<pallas_src>
import functools
import math

import jax
import jax.numpy as jnp
from jax.experimental import pallas as pl
from jax.experimental.pallas import tpu as pltpu


def _round_up(x: int, m: int) -> int:
    return ((x + m - 1) // m) * m


def _vmem_limits():
    """Per-generation scoped-VMEM (limit, budget) in bytes."""
    try:
        cap = int(pltpu.get_tpu_info().vmem_capacity_bytes)
    except Exception:
        cap = 64 * 1024 * 1024  # conservative (v7x-sized) fallback
    limit = min(3 * cap // 4, 96 * 1024 * 1024)  # ~96 MiB on v5e/v6e, ~48 MiB on v7x
    budget = 3 * limit // 4                       # headroom for Mosaic-internal scratch
    return budget, limit


def _choose_tm(M: int, k_cols: int, n_cols: int, w_bytes: int, bpe: int,
               budget: int) -> int:
    """M tile: packed-sublane aligned; double-buffered x/out streams + a single
    resident weight copy within the VMEM budget.  Prefers an exact divisor of M
    (no ragged tail); otherwise the caller uses a pl.cdiv grid."""
    sub = max(8, 32 // bpe)  # 8 for f32, 16 for bf16, 32 for int8/fp8
    tm = 1024
    while tm > sub and 2 * tm * (k_cols + n_cols) * bpe + w_bytes > budget:
        tm //= 2
    tm = max(sub, tm)
    if M <= tm:
        return M  # single block spanning the full dim is always layout-legal
    # Prefer a divisor of M within 2x of the budget tile (no ragged last block).
    for t in range(tm, max(sub, tm // 2) - 1, -sub):
        if M % t == 0:
            return t
    return tm  # ragged last tile handled by the cdiv grid (writes are clipped)


def _grouped_kernel(x_ref, w_ref, o_ref, *, gpb: int, ws: int, hg: int):
    # x_ref: (tm, gpb*ws)   w_ref: (1, gpb, ws, hg)   o_ref: (tm, gpb*hg)
    for g in range(gpb):  # static unroll; one MXU dot per group, no FLOP inflation
        o_ref[:, g * hg:(g + 1) * hg] = jnp.dot(
            x_ref[:, g * ws:(g + 1) * ws], w_ref[0, g],
            preferred_element_type=jnp.float32,
        ).astype(o_ref.dtype)


def _pallas_grouped(x2, w4, tm, n_gb, gpb, ws, hg, out_cols, out_dtype,
                    vmem_limit, cost, single_buffer_weight):
    M = x2.shape[0]
    grid_m = pl.cdiv(M, tm)
    kernel = functools.partial(_grouped_kernel, gpb=gpb, ws=ws, hg=hg)
    # Weight block index never changes along the inner M axis -> single buffer.
    wkw = {"pipeline_mode": pl.Buffered(1)} if single_buffer_weight else {}

    if n_gb == 1:
        # Single group block: make M the (only) parallel axis so both v7x
        # TensorCores get work; weight block index is constant -> fetched once.
        grid = (grid_m,)
        in_specs = [
            pl.BlockSpec((tm, gpb * ws), lambda m: (m, 0)),
            pl.BlockSpec((1, gpb, ws, hg), lambda m: (0, 0, 0, 0), **wkw),
        ]
        out_spec = pl.BlockSpec((tm, gpb * hg), lambda m: (m, 0))
        dims = ("parallel",)
    else:
        # Group-blocks outer, M-tiles inner: weight stays resident per group block.
        grid = (n_gb, grid_m)
        in_specs = [
            pl.BlockSpec((tm, gpb * ws), lambda g, m: (m, g)),
            pl.BlockSpec((1, gpb, ws, hg), lambda g, m: (g, 0, 0, 0), **wkw),
        ]
        out_spec = pl.BlockSpec((tm, gpb * hg), lambda g, m: (m, g))
        dims = ("parallel", "parallel")

    return pl.pallas_call(
        kernel,
        out_shape=jax.ShapeDtypeStruct((M, out_cols), out_dtype),
        grid=grid,
        in_specs=in_specs,
        out_specs=out_spec,
        compiler_params=pltpu.CompilerParams(
            dimension_semantics=dims, vmem_limit_bytes=vmem_limit),
        cost_estimate=cost,
    )(x2, w4)


def grouped_linear_einsum(x: jax.Array, weight: jax.Array) -> jax.Array:
    """x: (B, T, input_size), weight: (groups, ws, hidden_size // groups)."""
    B, T, input_size = x.shape
    G, ws, hg = weight.shape
    assert input_size == G * ws
    hidden_size = G * hg
    M = B * T

    weight = weight.astype(x.dtype)
    bpe = jnp.dtype(x.dtype).itemsize
    budget, vmem_limit = _vmem_limits()

    # Free, contiguous reshape (no transpose): (B, T, input) -> (M, input)
    x2 = x.reshape(M, input_size)

    if ws % 128 == 0 and hg % 128 == 0:
        # --- Lane-aligned per-group path, with group fusion ------------------------
        # Fuse groups until the x / out column slabs reach >=256 lanes (fills the
        # 256-wide MXU on v6e/v7x and fattens the strided DMA row segments).
        gpb = 1
        while G % (2 * gpb) == 0 and (gpb * ws < 256 or gpb * hg < 256):
            gpb *= 2
        n_gb = G // gpb
        w4 = weight.reshape(n_gb, gpb, ws, hg)
        kc, nc = gpb * ws, gpb * hg
        w_blk_bytes = gpb * ws * hg * bpe
        flops = 2 * M * G * ws * hg
        w_total_bytes = G * ws * hg * bpe
        kern_gpb, kern_ws, kern_hg = gpb, ws, hg
    else:
        # --- Unaligned groups: block-diagonal group chunks -------------------------
        # Smallest chunk of groups whose K/N column widths are 128-aligned; falls back
        # to a single fully-dense block-diagonal weight only when none exists.
        gpb = G
        for c in range(1, G):
            if G % c == 0 and (c * ws) % 128 == 0 and (c * hg) % 128 == 0:
                gpb = c
                break
        n_gb = G // gpb
        kc, nc = gpb * ws, gpb * hg
        eye = jnp.eye(gpb, dtype=weight.dtype)
        w4 = jnp.einsum("cgih,gk->cgikh",
                        weight.reshape(n_gb, gpb, ws, hg), eye
                        ).reshape(n_gb, 1, kc, nc)  # block-diagonal per chunk
        w_blk_bytes = kc * nc * bpe
        flops = 2 * M * n_gb * kc * nc
        w_total_bytes = n_gb * kc * nc * bpe
        kern_gpb, kern_ws, kern_hg = 1, kc, nc

    tm = _choose_tm(M, kc, nc, w_blk_bytes, bpe, budget)

    cost = pl.CostEstimate(
        flops=int(flops),
        transcendentals=0,
        bytes_accessed=int((M * input_size + M * hidden_size) * bpe + w_total_bytes),
    )

    try:
        out = _pallas_grouped(x2, w4, tm, n_gb, kern_gpb, kern_ws, kern_hg,
                              hidden_size, x.dtype, vmem_limit, cost,
                              single_buffer_weight=True)
    except Exception:
        # pl.Buffered(1) (single-buffered resident weight) may be unsupported on some
        # jaxlib builds; retry with the default double-buffered weight.
        out = _pallas_grouped(x2, w4, tm, n_gb, kern_gpb, kern_ws, kern_hg,
                              hidden_size, x.dtype, vmem_limit, cost,
                              single_buffer_weight=False)

    return out.reshape(B, T, hidden_size)


def init_weight(key, groups: int, input_size: int, hidden_size: int) -> jax.Array:
    """kaiming_uniform_(a=sqrt(5)) equivalent for the (G, ws, hg) weight."""
    ws = input_size // groups
    hg = hidden_size // groups
    fan_in = ws * hg  # PyTorch fan_in for a 3-D tensor: size(1) * prod(dims[2:])
    gain = math.sqrt(2.0 / (1.0 + 5.0))  # a = sqrt(5)
    bound = gain * math.sqrt(3.0 / fan_in)
    return jax.random.uniform(
        key, (groups, ws, hg), dtype=jnp.float32, minval=-bound, maxval=bound
    )


def _reference(x, weight):
    B, T, _ = x.shape
    G, ws, hg = weight.shape
    xr = x.reshape(B, T, G, ws)
    return jnp.einsum(
        "btgi,gih->btgh", xr, weight, precision=jax.lax.Precision.HIGHEST
    ).reshape(B, T, G * hg)


if __name__ == "__main__":
    key = jax.random.PRNGKey(0)
    k = jax.random.split(key, 6)

    # --- Test 1: small unaligned groups (module-spec shapes) -> dense fallback -----
    B, T, input_size, hidden_size, groups = 2, 8, 32, 32, 4
    x1 = jax.random.normal(k[0], (B, T, input_size), dtype=jnp.float32)
    w1 = init_weight(k[1], groups, input_size, hidden_size)
    out1 = jax.block_until_ready(grouped_linear_einsum(x1, w1))
    assert out1.shape == (B, T, hidden_size)
    assert jnp.allclose(out1, _reference(x1, w1), atol=1e-3, rtol=1e-3)

    # --- Test 2: lane-aligned ws=hg=128, G=2 -> fused groups, single group block ---
    B, T, input_size, hidden_size, groups = 2, 64, 256, 256, 2
    x2 = jax.random.normal(k[2], (B, T, input_size), dtype=jnp.float32)
    w2 = init_weight(k[3], groups, input_size, hidden_size)
    out2 = jax.block_until_ready(grouped_linear_einsum(x2, w2))
    assert out2.shape == (B, T, hidden_size)
    assert jnp.allclose(out2, _reference(x2, w2), atol=1e-3, rtol=1e-3)

    # --- Test 3: ws=hg=128, G=4 -> fused gpb=2, 2-D (group-block, M-tile) grid -----
    B, T, input_size, hidden_size, groups = 2, 64, 512, 512, 4
    x3 = jax.random.normal(k[4], (B, T, input_size), dtype=jnp.float32)
    w3 = init_weight(k[5], groups, input_size, hidden_size)
    out3 = jax.block_until_ready(grouped_linear_einsum(x3, w3))
    assert out3.shape == (B, T, hidden_size)
    assert jnp.allclose(out3, _reference(x3, w3), atol=1e-3, rtol=1e-3)

    print("KERNEL_OK")
</pallas_src>

<mosaic_0001>
module attributes {stable_mosaic.version = 11 : i64} {
  func.func @_grouped_kernel(%arg0: i32, %arg1: memref<16x32xf32, #tpu.memory_space<vmem>>, %arg2: memref<1x1x32x32xf32, #tpu.memory_space<vmem>>, %arg3: memref<16x32xf32, #tpu.memory_space<vmem>>) attributes {dimension_semantics = [#tpu.dimension_semantics<parallel>], iteration_bounds = array<i64: 1>, scalar_prefetch = 0 : i64, scratch_operands = 0 : i64, tpu.core_type = #tpu.core_type<tc>, window_params = [{transform_indices = @transform_0, window_bounds = array<i64: 16, 32>}, {pipeline_mode = #tpu.pipeline_mode<synchronous>, transform_indices = @transform_1, window_bounds = array<i64: 1, 1, 32, 32>}, {transform_indices = @transform_2, window_bounds = array<i64: 16, 32>}]} {
    %c0 = arith.constant 0 : index
    %c0_0 = arith.constant 0 : index
    %0 = vector.load %arg1[%c0, %c0_0] : memref<16x32xf32, #tpu.memory_space<vmem>>, vector<16x32xf32>
    %c0_1 = arith.constant 0 : index
    %c0_2 = arith.constant 0 : index
    %c0_3 = arith.constant 0 : index
    %c0_4 = arith.constant 0 : index
    %1 = vector.load %arg2[%c0_1, %c0_2, %c0_3, %c0_4] : memref<1x1x32x32xf32, #tpu.memory_space<vmem>>, vector<1x1x32x32xf32>
    %2 = vector.shape_cast %1 : vector<1x1x32x32xf32> to vector<32x32xf32>
    %cst = arith.constant dense<0.000000e+00> : vector<16x32xf32>
    %3 = tpu.matmul %0, %2, %cst {dimension_numbers = #tpu.dot_dimension_numbers<[1], [0], [0], [1], [0, 0, 1, 1], [], []>} : vector<16x32xf32>, vector<32x32xf32>, vector<16x32xf32> -> vector<16x32xf32>
    %c0_5 = arith.constant 0 : index
    %c0_6 = arith.constant 0 : index
    %4 = vector.load %arg3[%c0_5, %c0_6] : memref<16x32xf32, #tpu.memory_space<vmem>>, vector<16x32xf32>
    tpu.vector_store %arg3[%c0_5, %c0_6], %3 {strides = array<i32>} : memref<16x32xf32, #tpu.memory_space<vmem>>, vector<16x32xf32>,
    return
  }
  func.func @transform_0(%arg0: i32) -> (i32, i32) {
    %c0_i32 = arith.constant 0 : i32
    %c0_i32_0 = arith.constant 0 : i32
    return %arg0, %c0_i32 : i32, i32
  }
  func.func @transform_1(%arg0: i32) -> (i32, i32, i32, i32) {
    %c0_i32 = arith.constant 0 : i32
    %c0_i32_0 = arith.constant 0 : i32
    %c0_i32_1 = arith.constant 0 : i32
    %c0_i32_2 = arith.constant 0 : i32
    %c0_i32_3 = arith.constant 0 : i32
    return %c0_i32, %c0_i32_0, %c0_i32_1, %c0_i32_2 : i32, i32, i32, i32
  }
  func.func @transform_2(%arg0: i32) -> (i32, i32) {
    %c0_i32 = arith.constant 0 : i32
    %c0_i32_0 = arith.constant 0 : i32
    return %arg0, %c0_i32 : i32, i32
  }
}

module attributes {stable_mosaic.version = 11 : i64} {
  func.func @_grouped_kernel(%arg0: i32, %arg1: memref<16x32xf32, #tpu.memory_space<vmem>>, %arg2: memref<1x1x32x32xf32, #tpu.memory_space<vmem>>, %arg3: memref<16x32xf32, #tpu.memory_space<vmem>>) attributes {dimension_semantics = [#tpu.dimension_semantics<parallel>], iteration_bounds = array<i64: 1>, scalar_prefetch = 0 : i64, scratch_operands = 0 : i64, tpu.core_type = #tpu.core_type<tc>, window_params = [{transform_indices = @transform_0, window_bounds = array<i64: 16, 32>}, {pipeline_mode = #tpu.pipeline_mode<synchronous>, transform_indices = @transform_1, window_bounds = array<i64: 1, 1, 32, 32>}, {transform_indices = @transform_2, window_bounds = array<i64: 16, 32>}]} {
    %c0 = arith.constant 0 : index
    %c0_0 = arith.constant 0 : index
    %0 = vector.load %arg1[%c0, %c0_0] : memref<16x32xf32, #tpu.memory_space<vmem>>, vector<16x32xf32>
    %c0_1 = arith.constant 0 : index
    %c0_2 = arith.constant 0 : index
    %c0_3 = arith.constant 0 : index
    %c0_4 = arith.constant 0 : index
    %1 = vector.load %arg2[%c0_1, %c0_2, %c0_3, %c0_4] : memref<1x1x32x32xf32, #tpu.memory_space<vmem>>, vector<1x1x32x32xf32>
    %2 = vector.shape_cast %1 : vector<1x1x32x32xf32> to vector<32x32xf32>
    %cst = arith.constant dense<0.000000e+00> : vector<16x32xf32>
    %3 = tpu.matmul %0, %2, %cst {dimension_numbers = #tpu.dot_dimension_numbers<[1], [0], [0], [1], [0, 0, 1, 1], [], []>} : vector<16x32xf32>, vector<32x32xf32>, vector<16x32xf32> -> vector<16x32xf32>
    %c0_5 = arith.constant 0 : index
    %c0_6 = arith.constant 0 : index
    %4 = vector.load %arg3[%c0_5, %c0_6] : memref<16x32xf32, #tpu.memory_space<vmem>>, vector<16x32xf32>
    tpu.vector_store %arg3[%c0_5, %c0_6], %3 {strides = array<i32>} : memref<16x32xf32, #tpu.memory_space<vmem>>, vector<16x32xf32>,
    return
  }
  func.func @transform_0(%arg0: i32) -> (i32, i32) {
    %c0_i32 = arith.constant 0 : i32
    %c0_i32_0 = arith.constant 0 : i32
    return %arg0, %c0_i32 : i32, i32
  }
  func.func @transform_1(%arg0: i32) -> (i32, i32, i32, i32) {
    %c0_i32 = arith.constant 0 : i32
    %c0_i32_0 = arith.constant 0 : i32
    %c0_i32_1 = arith.constant 0 : i32
    %c0_i32_2 = arith.constant 0 : i32
    %c0_i32_3 = arith.constant 0 : i32
    return %c0_i32, %c0_i32_0, %c0_i32_1, %c0_i32_2 : i32, i32, i32, i32
  }
  func.func @transform_2(%arg0: i32) -> (i32, i32) {
    %c0_i32 = arith.constant 0 : i32
    %c0_i32_0 = arith.constant 0 : i32
    return %arg0, %c0_i32 : i32, i32
  }
}

</mosaic_0001>

<llo_original>
// kernel: tpu_custom_call.1
$region0: #{tpu_custom_call.1}
  #allocation0 [shape = 'u32[]', space=smem, size = 0x4, offset = 0x4, fixed_abs, tag = 'smem constant byte address 0x4 - core index']
  #allocation1 [shape = 'u32[72,128]{1,0:T(1,128)}', space=vmem, size = 0x9000, scoped, tag = 'internal scratch']
  %s0 = inlined_call_operand.hbm [shape: f32[16,32], index: 0, kind: input, shape index: {}]
  %s1 = inlined_call_operand.hbm [shape: f32[1,1,32,32], index: 1, kind: input, shape index: {}]
  %s2 = inlined_call_operand.hbm [shape: f32[16,32], index: 2, kind: output, shape index: {}]
  %s3 = sld [smem:[#allocation0]]
  $region26: #{tpu_custom_call.1} parent=0
    _
  %s5 = ssub.s32 1, %s3
  %s6 = scalar_select 0, %s5, %s3
  $region1: #{tpu_custom_call.1} parent=0
    #allocation2 [shape = 'u8[8192]{0}', space=vmem, size = 0x2000, scoped, tag = 'input window, operand 0, single buffered']
    #allocation3 [shape = 's32[1]{0}', space=sflag, size = 0x4, scoped, tag = 'scoped memory for tpu_custom_call.1']
    #allocation4 [shape = 's32[1]{0}', space=sflag, size = 0x4, scoped, tag = 'scoped memory for tpu_custom_call.1']
    #allocation5 [shape = 'u8[16384]{0}', space=vmem, size = 0x4000, scoped, tag = 'input window, operand 1, single buffered']
    #allocation6 [shape = 's32[1]{0}', space=sflag, size = 0x4, scoped, tag = 'scoped memory for tpu_custom_call.1']
    #allocation7 [shape = 'u8[8192]{0}', space=vmem, size = 0x2000, scoped, tag = 'output window, operand 0, single buffered']
    %7 = vsyncpa [#allocation3], 0
    %8 = vsyncpa [#allocation6], 0
    %9 = vsyncpa [#allocation4], 0
    // Predicated region
    $region2: #{tpu_custom_call.1} parent=1 // pred_check
      _
    $region3: #{tpu_custom_call.1} parent=1 // pred_check_branch
      %11 = sbr.rel (0) target = $region5
    $region4: #{tpu_custom_call.1} parent=1 // pred_region
      %13 = vsyncadd [#allocation3], 0
      %s14 = sshll.u32 %s0, 4
      %s15 = int_to_ptr.hbm [resolvable:$true] %s14
      %s16 = sshll.u32 [#allocation2], 4
      %s17 = int_to_ptr.vmem [resolvable:$true] %s16
      %22 = dma.hbm_to_vmem [thread:$0]  %s15, 256, %s17, [#allocation3], 128, 128, 8
    $region5: #{tpu_custom_call.1} parent=1 // pred_fallthru
      _
    // Predicated region
    $region6: #{tpu_custom_call.1} parent=1 // pred_check
      _
    $region7: #{tpu_custom_call.1} parent=1 // pred_check_branch
      %24 = sbr.rel (0) target = $region9
    $region8: #{tpu_custom_call.1} parent=1 // pred_region
      %26 = vsyncadd [#allocation6], 0
      %s27 = sshll.u32 %s1, 4
      %s28 = int_to_ptr.hbm [resolvable:$true] %s27
      %s29 = sshll.u32 [#allocation5], 4
      %s30 = int_to_ptr.vmem [resolvable:$true] %s29
      %35 = dma.hbm_to_vmem [thread:$0]  %s28, 512, %s30, [#allocation6], 128, 128, 8
    $region9: #{tpu_custom_call.1} parent=1 // pred_fallthru
      _
    // Predicated region
    $region10: #{tpu_custom_call.1} parent=1 // pred_check
      _
    $region11: #{tpu_custom_call.1} parent=1 // pred_check_branch
      %37 = sbr.rel (0) target = $region13
    $region12: #{tpu_custom_call.1} parent=1 // pred_region
      %39 = dma.done [#allocation3], 256
    $region13: #{tpu_custom_call.1} parent=1 // pred_fallthru
      _
    // Predicated region
    $region14: #{tpu_custom_call.1} parent=1 // pred_check
      _
    $region15: #{tpu_custom_call.1} parent=1 // pred_check_branch
      %41 = sbr.rel (0) target = $region17
    $region16: #{tpu_custom_call.1} parent=1 // pred_region
      %43 = dma.done [#allocation6], 512
    $region17: #{tpu_custom_call.1} parent=1 // pred_fallthru
      _
    %v44 = vld [vmem:[#allocation2] sm:$0xff]
    %v45 = vld [vmem:[#allocation2 + $0x8] sm:$0xff]
    %v46 = vld [vmem:[#allocation5] sm:$0xff]
    %v47 = vld [vmem:[#allocation5 + $0x8] sm:$0xff]
    %v48 = vld [vmem:[#allocation5 + $0x10] sm:$0xff]
    %v49 = vld [vmem:[#allocation5 + $0x18] sm:$0xff]
    %vm50 = vcmask 261120
    %v52 = vsel %vm50, %v44, 0
    %v55 = vsel %vm50, %v45, 0
    %57 = vmatpush.msra.mxu0 0.0
    %58 = vmatpush.msra.mxu0 0.0
    %59 = vmatpush.msra.mxu0 0.0
    %60 = vmatpush.msra.mxu0 0.0
    %61 = vmatpush.msra.mxu0 0.0
    %62 = vmatpush.msra.mxu0 0.0
    %63 = vmatpush.msra.mxu0 0.0
    %64 = vmatpush.msra.mxu0 0.0
    %65 = vmatpush.msra.mxu0 0.0
    %66 = vmatpush.msra.mxu0 0.0
    %67 = vmatpush.msra.mxu0 0.0
    %68 = vmatpush.msra.mxu0 0.0
    %69 = vmatpush.msra.mxu0 %v49
    %70 = vmatpush.msra.mxu0 %v48
    %71 = vmatpush.msra.mxu0 %v47
    %72 = vmatpush.msra.mxu0 %v46
    %73 = vmatmul.f32.gmra.mxu0 %v52
    %v74 = vpop.f32.mrf.mxu0
    %v75 = vadd.f32 0.0, %v74
    %76 = vmatmul.f32.gmra.mxu0 %v55
    %v77 = vpop.f32.mrf.mxu0
    %v78 = vadd.f32 0.0, %v77
    %79 = vdwg.mxu0
    %80 = vst.msk [vmem:[#allocation7] sm:$0xff] %vm50, %v75
    %81 = vst.msk [vmem:[#allocation7 + $0x8] sm:$0xff] %vm50, %v78
    // Predicated region
    $region18: #{tpu_custom_call.1} parent=1 // pred_check
      _
    $region19: #{tpu_custom_call.1} parent=1 // pred_check_branch
      %83 = sbr.rel (0) target = $region21
    $region20: #{tpu_custom_call.1} parent=1 // pred_region
      %85 = vsyncadd [#allocation4], 0
      %s86 = sshll.u32 [#allocation7], 4
      %s87 = int_to_ptr.vmem [resolvable:$true] %s86
      %s88 = sshll.u32 %s2, 4
      %s89 = int_to_ptr.hbm [resolvable:$true] %s88
      %94 = dma.vmem_to_hbm [thread:$0]  %s87, 256, %s89, [#allocation4], 128, 128, 8
    $region21: #{tpu_custom_call.1} parent=1 // pred_fallthru
      _
    // Predicated region
    $region22: #{tpu_custom_call.1} parent=1 // pred_check
      _
    $region23: #{tpu_custom_call.1} parent=1 // pred_check_branch
      %96 = sbr.rel (0) target = $region25
    $region24: #{tpu_custom_call.1} parent=1 // pred_region
      %98 = dma.done [#allocation4], 256
    $region25: #{tpu_custom_call.1} parent=1 // pred_fallthru
      _
    %99 = vsyncpa [#allocation3], 1
    %100 = vsyncpa [#allocation6], 1
    %101 = vsyncpa [#allocation4], 1

// kernel: tpu_custom_call.1
$region0: #{tpu_custom_call.1}
  #allocation0 [shape = 'u32[]', space=smem, size = 0x4, offset = 0x4, fixed_abs, tag = 'smem constant byte address 0x4 - core index']
  #allocation1 [shape = 'u32[72,128]{1,0:T(1,128)}', space=vmem, size = 0x9000, scoped, tag = 'internal scratch']
  %s0 = inlined_call_operand.hbm [shape: f32[16,32], index: 0, kind: input, shape index: {}]
  %s1 = inlined_call_operand.hbm [shape: f32[1,1,32,32], index: 1, kind: input, shape index: {}]
  %s2 = inlined_call_operand.hbm [shape: f32[16,32], index: 2, kind: output, shape index: {}]
  %s3 = sld [smem:[#allocation0]]
  $region26: #{tpu_custom_call.1} parent=0
    _
  %s5 = ssub.s32 1, %s3
  %s6 = scalar_select 0, %s5, %s3
  $region1: #{tpu_custom_call.1} parent=0
    #allocation2 [shape = 'u8[8192]{0}', space=vmem, size = 0x2000, scoped, tag = 'input window, operand 0, single buffered']
    #allocation3 [shape = 's32[1]{0}', space=sflag, size = 0x4, scoped, tag = 'scoped memory for tpu_custom_call.1']
    #allocation4 [shape = 's32[1]{0}', space=sflag, size = 0x4, scoped, tag = 'scoped memory for tpu_custom_call.1']
    #allocation5 [shape = 'u8[16384]{0}', space=vmem, size = 0x4000, scoped, tag = 'input window, operand 1, single buffered']
    #allocation6 [shape = 's32[1]{0}', space=sflag, size = 0x4, scoped, tag = 'scoped memory for tpu_custom_call.1']
    #allocation7 [shape = 'u8[8192]{0}', space=vmem, size = 0x2000, scoped, tag = 'output window, operand 0, single buffered']
    %7 = vsyncpa [#allocation3], 0
    %8 = vsyncpa [#allocation6], 0
    %9 = vsyncpa [#allocation4], 0
    // Predicated region
    $region2: #{tpu_custom_call.1} parent=1 // pred_check
      _
    $region3: #{tpu_custom_call.1} parent=1 // pred_check_branch
      %11 = sbr.rel (0) target = $region5
    $region4: #{tpu_custom_call.1} parent=1 // pred_region
      %13 = vsyncadd [#allocation3], 0
      %s14 = sshll.u32 %s0, 4
      %s15 = int_to_ptr.hbm [resolvable:$true] %s14
      %s16 = sshll.u32 [#allocation2], 4
      %s17 = int_to_ptr.vmem [resolvable:$true] %s16
      %22 = dma.hbm_to_vmem [thread:$0]  %s15, 256, %s17, [#allocation3], 128, 128, 8
    $region5: #{tpu_custom_call.1} parent=1 // pred_fallthru
      _
    // Predicated region
    $region6: #{tpu_custom_call.1} parent=1 // pred_check
      _
    $region7: #{tpu_custom_call.1} parent=1 // pred_check_branch
      %24 = sbr.rel (0) target = $region9
    $region8: #{tpu_custom_call.1} parent=1 // pred_region
      %26 = vsyncadd [#allocation6], 0
      %s27 = sshll.u32 %s1, 4
      %s28 = int_to_ptr.hbm [resolvable:$true] %s27
      %s29 = sshll.u32 [#allocation5], 4
      %s30 = int_to_ptr.vmem [resolvable:$true] %s29
      %35 = dma.hbm_to_vmem [thread:$0]  %s28, 512, %s30, [#allocation6], 128, 128, 8
    $region9: #{tpu_custom_call.1} parent=1 // pred_fallthru
      _
    // Predicated region
    $region10: #{tpu_custom_call.1} parent=1 // pred_check
      _
    $region11: #{tpu_custom_call.1} parent=1 // pred_check_branch
      %37 = sbr.rel (0) target = $region13
    $region12: #{tpu_custom_call.1} parent=1 // pred_region
      %39 = dma.done [#allocation3], 256
    $region13: #{tpu_custom_call.1} parent=1 // pred_fallthru
      _
    // Predicated region
    $region14: #{tpu_custom_call.1} parent=1 // pred_check
      _
    $region15: #{tpu_custom_call.1} parent=1 // pred_check_branch
      %41 = sbr.rel (0) target = $region17
    $region16: #{tpu_custom_call.1} parent=1 // pred_region
      %43 = dma.done [#allocation6], 512
    $region17: #{tpu_custom_call.1} parent=1 // pred_fallthru
      _
    %v44 = vld [vmem:[#allocation2] sm:$0xff]
    %v45 = vld [vmem:[#allocation2 + $0x8] sm:$0xff]
    %v46 = vld [vmem:[#allocation5] sm:$0xff]
    %v47 = vld [vmem:[#allocation5 + $0x8] sm:$0xff]
    %v48 = vld [vmem:[#allocation5 + $0x10] sm:$0xff]
    %v49 = vld [vmem:[#allocation5 + $0x18] sm:$0xff]
    %vm50 = vcmask 261120
    %v52 = vsel %vm50, %v44, 0
    %v55 = vsel %vm50, %v45, 0
    %57 = vmatpush.msra.mxu0 0.0
    %58 = vmatpush.msra.mxu0 0.0
    %59 = vmatpush.msra.mxu0 0.0
    %60 = vmatpush.msra.mxu0 0.0
    %61 = vmatpush.msra.mxu0 0.0
    %62 = vmatpush.msra.mxu0 0.0
    %63 = vmatpush.msra.mxu0 0.0
    %64 = vmatpush.msra.mxu0 0.0
    %65 = vmatpush.msra.mxu0 0.0
    %66 = vmatpush.msra.mxu0 0.0
    %67 = vmatpush.msra.mxu0 0.0
    %68 = vmatpush.msra.mxu0 0.0
    %69 = vmatpush.msra.mxu0 %v49
    %70 = vmatpush.msra.mxu0 %v48
    %71 = vmatpush.msra.mxu0 %v47
    %72 = vmatpush.msra.mxu0 %v46
    %73 = vmatmul.f32.gmra.mxu0 %v52
    %v74 = vpop.f32.mrf.mxu0
    %v75 = vadd.f32 0.0, %v74
    %76 = vmatmul.f32.gmra.mxu0 %v55
    %v77 = vpop.f32.mrf.mxu0
    %v78 = vadd.f32 0.0, %v77
    %79 = vdwg.mxu0
    %80 = vst.msk [vmem:[#allocation7] sm:$0xff] %vm50, %v75
    %81 = vst.msk [vmem:[#allocation7 + $0x8] sm:$0xff] %vm50, %v78
    // Predicated region
    $region18: #{tpu_custom_call.1} parent=1 // pred_check
      _
    $region19: #{tpu_custom_call.1} parent=1 // pred_check_branch
      %83 = sbr.rel (0) target = $region21
    $region20: #{tpu_custom_call.1} parent=1 // pred_region
      %85 = vsyncadd [#allocation4], 0
      %s86 = sshll.u32 [#allocation7], 4
      %s87 = int_to_ptr.vmem [resolvable:$true] %s86
      %s88 = sshll.u32 %s2, 4
      %s89 = int_to_ptr.hbm [resolvable:$true] %s88
      %94 = dma.vmem_to_hbm [thread:$0]  %s87, 256, %s89, [#allocation4], 128, 128, 8
    $region21: #{tpu_custom_call.1} parent=1 // pred_fallthru
      _
    // Predicated region
    $region22: #{tpu_custom_call.1} parent=1 // pred_check
      _
    $region23: #{tpu_custom_call.1} parent=1 // pred_check_branch
      %96 = sbr.rel (0) target = $region25
    $region24: #{tpu_custom_call.1} parent=1 // pred_region
      %98 = dma.done [#allocation4], 256
    $region25: #{tpu_custom_call.1} parent=1 // pred_fallthru
      _
    %99 = vsyncpa [#allocation3], 1
    %100 = vsyncpa [#allocation6], 1
    %101 = vsyncpa [#allocation4], 1

</llo_original>
